<compile_context>
chip_gen: v5e
topology: v5e:2x2
jax: 0.10.0
libtpu: 0.0.40
codegen_flags: <defaults>
</compile_context>

<pallas_src>
import jax
import jax.numpy as jnp
from jax.experimental import pallas as pl
from jax.experimental.pallas import tpu as pltpu


_LANES = 1024       # lane-dense last dim (multiple of 128)
_BLOCK_ROWS = 256   # (256, 1024) f32 = 1 MiB per block per pipeline buffer


# ---------------------------------------------------------------------------
# Kernels (purely elementwise, lane-dense tiles)
# ---------------------------------------------------------------------------
def _gumbel_train_kernel(x_ref, u_ref, o_ref):
    """Training forward: hard gate from logistic (gumbel) noise, via one exp + compare."""
    eps = jnp.float32(1e-8)
    u = u_ref[...]
    # logits + log(u+eps) - log(1-u+eps) >= 0   <=>   (u+eps) >= exp(-logits) * (1-u+eps)
    t = jnp.exp(-x_ref[...])
    hard = (u + eps) >= t * (jnp.float32(1.0) - u + eps)
    o_ref[...] = hard.astype(o_ref.dtype)


def _gumbel_eval_kernel(x_ref, o_ref):
    """Eval forward: hard threshold at 0."""
    o_ref[...] = (x_ref[...] >= jnp.float32(0.0)).astype(o_ref.dtype)


# ---------------------------------------------------------------------------
# Wrapper: lane-dense padding / tiling + pallas_call
# ---------------------------------------------------------------------------
def _tiling(num_elements: int):
    rows = max(1, pl.cdiv(num_elements, _LANES))
    rows = ((rows + 7) // 8) * 8            # sublane multiple
    block_rows = min(_BLOCK_ROWS, rows)
    grid = pl.cdiv(rows, block_rows)
    rows_padded = grid * block_rows
    return rows_padded, block_rows, grid


def _pad_to_lane_dense(flat: jax.Array, rows_padded: int) -> jax.Array:
    total = rows_padded * _LANES
    return jnp.pad(flat, (0, total - flat.shape[0])).reshape(rows_padded, _LANES)


def gumbel_softmax_forward(logits: jax.Array,
                           *,
                           training: bool = True,
                           eps: float = 1.0,
                           key: jax.Array | None = None) -> jax.Array:
    """Forward of the FBS GumbelSoftmax gate.  Returns hard 0/1 gates (float32)."""
    # Temperature only rescales the sigmoid; the hard-thresholded forward is invariant to it.
    del eps
    orig_shape = logits.shape
    flat = logits.reshape(-1).astype(jnp.float32)
    n = flat.shape[0]
    rows_padded, block_rows, grid = _tiling(n)

    x2d = _pad_to_lane_dense(flat, rows_padded)
    spec = pl.BlockSpec((block_rows, _LANES), lambda i: (i, 0))
    out_shape = jax.ShapeDtypeStruct((rows_padded, _LANES), jnp.float32)
    cparams = pltpu.CompilerParams(dimension_semantics=("parallel",))

    if not training:
        out2d = pl.pallas_call(
            _gumbel_eval_kernel,
            out_shape=out_shape,
            grid=(grid,),
            in_specs=[spec],
            out_specs=spec,
            compiler_params=cparams,
        )(x2d)
    else:
        if key is None:
            key = jax.random.PRNGKey(0)
        u = jax.random.uniform(key, (n,), dtype=jnp.float32)
        u2d = _pad_to_lane_dense(u, rows_padded)
        out2d = pl.pallas_call(
            _gumbel_train_kernel,
            out_shape=out_shape,
            grid=(grid,),
            in_specs=[spec, spec],
            out_specs=spec,
            compiler_params=cparams,
        )(x2d, u2d)

    return out2d.reshape(-1)[:n].reshape(orig_shape)


# ---------------------------------------------------------------------------
# Main
# ---------------------------------------------------------------------------
if __name__ == "__main__":
    root = jax.random.PRNGKey(0)
    k_logits, k_noise = jax.random.split(root)

    # Small (batch, channels) gate logits, as produced by the FBS saliency predictor.
    N, C = 4, 32
    logits = jax.random.normal(k_logits, (N, C), dtype=jnp.float32) * 2.0

    # Training-mode forward (stochastic hard gates via logistic/gumbel noise).
    out_train = gumbel_softmax_forward(logits, training=True, eps=1.0, key=k_noise)
    out_train = jax.block_until_ready(out_train)

    # Eval-mode forward (deterministic threshold at 0).
    out_eval = gumbel_softmax_forward(logits, training=False)
    out_eval = jax.block_until_ready(out_eval)

    # Shape / dtype sanity.
    assert out_train.shape == (N, C) and out_train.dtype == jnp.float32
    assert out_eval.shape == (N, C) and out_eval.dtype == jnp.float32
    # Training output must be binary {0, 1}.
    assert bool(jnp.all((out_train == 0.0) | (out_train == 1.0)))
    # Eval output must exactly match the reference threshold.
    assert bool(jnp.all(out_eval == (logits >= 0.0).astype(jnp.float32)))

    # Training reference: regenerate the same uniform noise and use the module's original
    # log-based formulation.  The in-kernel exp-folded threshold can only differ on exact
    # floating-point boundary ties, so allow at most one disagreement.
    u_ref = jax.random.uniform(k_noise, (N * C,), dtype=jnp.float32).reshape(N, C)
    g_ref = jnp.log(u_ref + 1e-8) - jnp.log(1.0 - u_ref + 1e-8)
    ref_train = ((logits + g_ref) >= 0.0).astype(jnp.float32)
    assert int(jnp.sum(out_train != ref_train)) <= 1

    print("KERNEL_OK")
</pallas_src>

<mosaic_0001>
module attributes {stable_mosaic.version = 11 : i64} {
  func.func @_gumbel_train_kernel(%arg0: i32, %arg1: memref<8x1024xf32, #tpu.memory_space<vmem>>, %arg2: memref<8x1024xf32, #tpu.memory_space<vmem>>, %arg3: memref<8x1024xf32, #tpu.memory_space<vmem>>) attributes {dimension_semantics = [#tpu.dimension_semantics<parallel>], iteration_bounds = array<i64: 1>, scalar_prefetch = 0 : i64, scratch_operands = 0 : i64, tpu.core_type = #tpu.core_type<tc>, window_params = [{transform_indices = @transform_0, window_bounds = array<i64: 8, 1024>}, {transform_indices = @transform_1, window_bounds = array<i64: 8, 1024>}, {transform_indices = @transform_2, window_bounds = array<i64: 8, 1024>}]} {
    %c0 = arith.constant 0 : index
    %c0_0 = arith.constant 0 : index
    %0 = vector.load %arg2[%c0, %c0_0] : memref<8x1024xf32, #tpu.memory_space<vmem>>, vector<8x1024xf32>
    %c0_1 = arith.constant 0 : index
    %c0_2 = arith.constant 0 : index
    %1 = vector.load %arg1[%c0_1, %c0_2] : memref<8x1024xf32, #tpu.memory_space<vmem>>, vector<8x1024xf32>
    %cst = arith.constant 0.000000e+00 : f32
    %2 = vector.broadcast %cst : f32 to vector<8x1024xf32>
    %3 = arith.subf %2, %1 : vector<8x1024xf32>
    %4 = math.exp %3 : vector<8x1024xf32>
    %cst_3 = arith.constant 9.99999993E-9 : f32
    %5 = vector.broadcast %cst_3 : f32 to vector<8x1024xf32>
    %6 = arith.addf %0, %5 : vector<8x1024xf32>
    %cst_4 = arith.constant 1.000000e+00 : f32
    %7 = vector.broadcast %cst_4 : f32 to vector<8x1024xf32>
    %8 = arith.subf %7, %0 : vector<8x1024xf32>
    %cst_5 = arith.constant 9.99999993E-9 : f32
    %9 = vector.broadcast %cst_5 : f32 to vector<8x1024xf32>
    %10 = arith.addf %8, %9 : vector<8x1024xf32>
    %11 = arith.mulf %4, %10 : vector<8x1024xf32>
    %12 = arith.cmpf oge, %6, %11 : vector<8x1024xf32>
    %13 = arith.extui %12 : vector<8x1024xi1> to vector<8x1024xi32>
    %14 = arith.sitofp %13 : vector<8x1024xi32> to vector<8x1024xf32>
    %c0_6 = arith.constant 0 : index
    %c0_7 = arith.constant 0 : index
    %15 = vector.load %arg3[%c0_6, %c0_7] : memref<8x1024xf32, #tpu.memory_space<vmem>>, vector<8x1024xf32>
    tpu.vector_store %arg3[%c0_6, %c0_7], %14 {strides = array<i32>} : memref<8x1024xf32, #tpu.memory_space<vmem>>, vector<8x1024xf32>,
    return
  }
  func.func @transform_0(%arg0: i32) -> (i32, i32) {
    %c0_i32 = arith.constant 0 : i32
    %c0_i32_0 = arith.constant 0 : i32
    return %arg0, %c0_i32 : i32, i32
  }
  func.func @transform_1(%arg0: i32) -> (i32, i32) {
    %c0_i32 = arith.constant 0 : i32
    %c0_i32_0 = arith.constant 0 : i32
    return %arg0, %c0_i32 : i32, i32
  }
  func.func @transform_2(%arg0: i32) -> (i32, i32) {
    %c0_i32 = arith.constant 0 : i32
    %c0_i32_0 = arith.constant 0 : i32
    return %arg0, %c0_i32 : i32, i32
  }
}

</mosaic_0001>

<llo_original>
// kernel: tpu_custom_call.1
$region0: #{tpu_custom_call.1}
  #allocation0 [shape = 'u32[]', space=smem, size = 0x4, offset = 0x4, fixed_abs, tag = 'smem constant byte address 0x4 - core index']
  #allocation1 [shape = 'u32[72,128]{1,0:T(1,128)}', space=vmem, size = 0x9000, scoped, tag = 'internal scratch']
  %s0 = inlined_call_operand.hbm [shape: f32[8,1024], index: 0, kind: input, shape index: {}]
  %s1 = inlined_call_operand.hbm [shape: f32[8,1024], index: 1, kind: input, shape index: {}]
  %s2 = inlined_call_operand.hbm [shape: f32[8,1024], index: 2, kind: output, shape index: {}]
  %s3 = sld [smem:[#allocation0]]
  $region26: #{tpu_custom_call.1} parent=0
    _
  %s5 = ssub.s32 1, %s3
  %s6 = scalar_select 0, %s5, %s3
  $region1: #{tpu_custom_call.1} parent=0
    #allocation2 [shape = 'u8[32768]{0}', space=vmem, size = 0x8000, scoped, tag = 'input window, operand 0, single buffered']
    #allocation3 [shape = 's32[1]{0}', space=sflag, size = 0x4, scoped, tag = 'scoped memory for tpu_custom_call.1']
    #allocation4 [shape = 's32[1]{0}', space=sflag, size = 0x4, scoped, tag = 'scoped memory for tpu_custom_call.1']
    #allocation5 [shape = 'u8[32768]{0}', space=vmem, size = 0x8000, scoped, tag = 'input window, operand 1, single buffered']
    #allocation6 [shape = 's32[1]{0}', space=sflag, size = 0x4, scoped, tag = 'scoped memory for tpu_custom_call.1']
    #allocation7 [shape = 'u8[32768]{0}', space=vmem, size = 0x8000, scoped, tag = 'output window, operand 0, single buffered']
    %7 = vsyncpa [#allocation3], 0
    %8 = vsyncpa [#allocation6], 0
    %9 = vsyncpa [#allocation4], 0
    // Predicated region
    $region2: #{tpu_custom_call.1} parent=1 // pred_check
      _
    $region3: #{tpu_custom_call.1} parent=1 // pred_check_branch
      %11 = sbr.rel (0) target = $region5
    $region4: #{tpu_custom_call.1} parent=1 // pred_region
      %13 = vsyncadd [#allocation3], 0
      %s15 = sshll.u32 %s0, 4
      %s16 = int_to_ptr.hbm [resolvable:$true] %s15
      %s17 = sshll.u32 [#allocation2], 4
      %s18 = int_to_ptr.vmem [resolvable:$true] %s17
      %20 = dma.hbm_to_vmem [thread:$0]  %s16, 1024, %s18, [#allocation3]
    $region5: #{tpu_custom_call.1} parent=1 // pred_fallthru
      _
    // Predicated region
    $region6: #{tpu_custom_call.1} parent=1 // pred_check
      _
    $region7: #{tpu_custom_call.1} parent=1 // pred_check_branch
      %22 = sbr.rel (0) target = $region9
    $region8: #{tpu_custom_call.1} parent=1 // pred_region
      %24 = vsyncadd [#allocation6], 0
      %s26 = sshll.u32 %s1, 4
      %s27 = int_to_ptr.hbm [resolvable:$true] %s26
      %s28 = sshll.u32 [#allocation5], 4
      %s29 = int_to_ptr.vmem [resolvable:$true] %s28
      %31 = dma.hbm_to_vmem [thread:$0]  %s27, 1024, %s29, [#allocation6]
    $region9: #{tpu_custom_call.1} parent=1 // pred_fallthru
      _
    // Predicated region
    $region10: #{tpu_custom_call.1} parent=1 // pred_check
      _
    $region11: #{tpu_custom_call.1} parent=1 // pred_check_branch
      %33 = sbr.rel (0) target = $region13
    $region12: #{tpu_custom_call.1} parent=1 // pred_region
      %35 = dma.done [#allocation3], 1024
    $region13: #{tpu_custom_call.1} parent=1 // pred_fallthru
      _
    // Predicated region
    $region14: #{tpu_custom_call.1} parent=1 // pred_check
      _
    $region15: #{tpu_custom_call.1} parent=1 // pred_check_branch
      %37 = sbr.rel (0) target = $region17
    $region16: #{tpu_custom_call.1} parent=1 // pred_region
      %39 = dma.done [#allocation6], 1024
    $region17: #{tpu_custom_call.1} parent=1 // pred_fallthru
      _
    %v40 = vld [vmem:[#allocation5] sm:$0xff]
    %v41 = vld [vmem:[#allocation5 + $0x8] sm:$0xff]
    %v42 = vld [vmem:[#allocation5 + $0x10] sm:$0xff]
    %v43 = vld [vmem:[#allocation5 + $0x18] sm:$0xff]
    %v44 = vld [vmem:[#allocation5 + $0x20] sm:$0xff]
    %v45 = vld [vmem:[#allocation5 + $0x28] sm:$0xff]
    %v46 = vld [vmem:[#allocation5 + $0x30] sm:$0xff]
    %v47 = vld [vmem:[#allocation5 + $0x38] sm:$0xff]
    %v48 = vld [vmem:[#allocation2] sm:$0xff]
    %v49 = vld [vmem:[#allocation2 + $0x8] sm:$0xff]
    %v50 = vld [vmem:[#allocation2 + $0x10] sm:$0xff]
    %v51 = vld [vmem:[#allocation2 + $0x18] sm:$0xff]
    %v52 = vld [vmem:[#allocation2 + $0x20] sm:$0xff]
    %v53 = vld [vmem:[#allocation2 + $0x28] sm:$0xff]
    %v54 = vld [vmem:[#allocation2 + $0x30] sm:$0xff]
    %v55 = vld [vmem:[#allocation2 + $0x38] sm:$0xff]
    %v56 = vsub.f32 0.0, %v48
    %v57 = vsub.f32 0.0, %v49
    %v58 = vsub.f32 0.0, %v50
    %v59 = vsub.f32 0.0, %v51
    %v60 = vsub.f32 0.0, %v52
    %v61 = vsub.f32 0.0, %v53
    %v62 = vsub.f32 0.0, %v54
    %v63 = vsub.f32 0.0, %v55
    %v64 = vmul.f32 %v56, 1.442695
    %v65 = vpow.pop %v64
    %v66 = vmul.f32 %v57, 1.442695
    %v67 = vpow.pop %v66
    %v68 = vmul.f32 %v58, 1.442695
    %v69 = vpow.pop %v68
    %v70 = vmul.f32 %v59, 1.442695
    %v71 = vpow.pop %v70
    %v72 = vmul.f32 %v60, 1.442695
    %v73 = vpow.pop %v72
    %v74 = vmul.f32 %v61, 1.442695
    %v75 = vpow.pop %v74
    %v76 = vmul.f32 %v62, 1.442695
    %v77 = vpow.pop %v76
    %v78 = vmul.f32 %v63, 1.442695
    %v79 = vpow.pop %v78
    %v80 = vadd.f32 %v40, 1e-08
    %v81 = vadd.f32 %v41, 1e-08
    %v82 = vadd.f32 %v42, 1e-08
    %v83 = vadd.f32 %v43, 1e-08
    %v84 = vadd.f32 %v44, 1e-08
    %v85 = vadd.f32 %v45, 1e-08
    %v86 = vadd.f32 %v46, 1e-08
    %v87 = vadd.f32 %v47, 1e-08
    %v88 = vsub.f32 1.0, %v40
    %v89 = vsub.f32 1.0, %v41
    %v90 = vsub.f32 1.0, %v42
    %v91 = vsub.f32 1.0, %v43
    %v92 = vsub.f32 1.0, %v44
    %v93 = vsub.f32 1.0, %v45
    %v94 = vsub.f32 1.0, %v46
    %v95 = vsub.f32 1.0, %v47
    %v96 = vadd.f32 %v88, 1e-08
    %v97 = vadd.f32 %v89, 1e-08
    %v98 = vadd.f32 %v90, 1e-08
    %v99 = vadd.f32 %v91, 1e-08
    %v100 = vadd.f32 %v92, 1e-08
    %v101 = vadd.f32 %v93, 1e-08
    %v102 = vadd.f32 %v94, 1e-08
    %v103 = vadd.f32 %v95, 1e-08
    %v104 = vmul.f32 %v65, %v96
    %v105 = vmul.f32 %v67, %v97
    %v106 = vmul.f32 %v69, %v98
    %v107 = vmul.f32 %v71, %v99
    %v108 = vmul.f32 %v73, %v100
    %v109 = vmul.f32 %v75, %v101
    %v110 = vmul.f32 %v77, %v102
    %v111 = vmul.f32 %v79, %v103
    %vm112 = vcmp.ge.f32.partialorder %v80, %v104
    %vm113 = vcmp.ge.f32.partialorder %v81, %v105
    %vm114 = vcmp.ge.f32.partialorder %v82, %v106
    %vm115 = vcmp.ge.f32.partialorder %v83, %v107
    %vm116 = vcmp.ge.f32.partialorder %v84, %v108
    %vm117 = vcmp.ge.f32.partialorder %v85, %v109
    %vm118 = vcmp.ge.f32.partialorder %v86, %v110
    %vm119 = vcmp.ge.f32.partialorder %v87, %v111
    %v120 = vsel %vm112, 1, 0
    %v121 = vsel %vm113, 1, 0
    %v122 = vsel %vm114, 1, 0
    %v123 = vsel %vm115, 1, 0
    %v124 = vsel %vm116, 1, 0
    %v125 = vsel %vm117, 1, 0
    %v126 = vsel %vm118, 1, 0
    %v127 = vsel %vm119, 1, 0
    %v128 = vcvt.s32.f32 %v120
    %v129 = vcvt.s32.f32 %v121
    %v130 = vcvt.s32.f32 %v122
    %v131 = vcvt.s32.f32 %v123
    %v132 = vcvt.s32.f32 %v124
    %v133 = vcvt.s32.f32 %v125
    %v134 = vcvt.s32.f32 %v126
    %v135 = vcvt.s32.f32 %v127
    %136 = vst [vmem:[#allocation7] sm:$0xff] %v128
    %137 = vst [vmem:[#allocation7 + $0x8] sm:$0xff] %v129
    %138 = vst [vmem:[#allocation7 + $0x10] sm:$0xff] %v130
    %139 = vst [vmem:[#allocation7 + $0x18] sm:$0xff] %v131
    %140 = vst [vmem:[#allocation7 + $0x20] sm:$0xff] %v132
    %141 = vst [vmem:[#allocation7 + $0x28] sm:$0xff] %v133
    %142 = vst [vmem:[#allocation7 + $0x30] sm:$0xff] %v134
    %143 = vst [vmem:[#allocation7 + $0x38] sm:$0xff] %v135
    // Predicated region
    $region18: #{tpu_custom_call.1} parent=1 // pred_check
      _
    $region19: #{tpu_custom_call.1} parent=1 // pred_check_branch
      %145 = sbr.rel (0) target = $region21
    $region20: #{tpu_custom_call.1} parent=1 // pred_region
      %147 = vsyncadd [#allocation4], 0
      %s149 = sshll.u32 [#allocation7], 4
      %s150 = int_to_ptr.vmem [resolvable:$true] %s149
      %s151 = sshll.u32 %s2, 4
      %s152 = int_to_ptr.hbm [resolvable:$true] %s151
      %154 = dma.vmem_to_hbm [thread:$0]  %s150, 1024, %s152, [#allocation4]
    $region21: #{tpu_custom_call.1} parent=1 // pred_fallthru
      _
    // Predicated region
    $region22: #{tpu_custom_call.1} parent=1 // pred_check
      _
    $region23: #{tpu_custom_call.1} parent=1 // pred_check_branch
      %156 = sbr.rel (0) target = $region25
    $region24: #{tpu_custom_call.1} parent=1 // pred_region
      %158 = dma.done [#allocation4], 1024
    $region25: #{tpu_custom_call.1} parent=1 // pred_fallthru
      _
    %159 = vsyncpa [#allocation3], 1
    %160 = vsyncpa [#allocation6], 1
    %161 = vsyncpa [#allocation4], 1

</llo_original>
